<compile_context>
chip_gen: v5e
topology: v5e:2x2
jax: 0.10.0
libtpu: 0.0.40
codegen_flags: <defaults>
</compile_context>

<pallas_src>
import functools

import jax
import jax.numpy as jnp
from jax import lax
from jax.experimental import pallas as pl
from jax.experimental.pallas import tpu as pltpu

_MAX_CHUNKS = 64          # cap on unrolled 128-lane chunk loop (code size / vregs)


def _gp_kernel(g_ref, out_ref, acc_ref, *, td, d_total, needs_mask):
    """One grid step = one (tn, td) lane-dense slab of the flattened gradient.

    g_ref:   (tn, td) block of grad_interp (input dtype; cast per-chunk in-kernel).
    out_ref: (1, 1) f32 SMEM partial penalty for this batch tile (written at finalize).
    acc_ref: (tn, 128) f32 VMEM accumulator, persistent across the reduction axis.
    """
    di = pl.program_id(1)

    @pl.when(di == 0)
    def _init():
        acc_ref[...] = jnp.zeros_like(acc_ref)

    n_chunks = td // 128
    tn = g_ref.shape[0]

    if needs_mask:
        # Global lane index of this block's chunk-0 lanes; reused for every chunk.
        lane = lax.broadcasted_iota(jnp.int32, (tn, 128), 1)
        lane_g = lane + di * td

    acc0 = jnp.zeros(acc_ref.shape, jnp.float32)
    acc1 = jnp.zeros(acc_ref.shape, jnp.float32)
    for c in range(n_chunks):
        # Static 128-lane ref slice: load + cast per chunk (keeps ~2 vregs live).
        chunk = g_ref[:, c * 128:(c + 1) * 128].astype(jnp.float32)
        if needs_mask:
            # Zero lanes past the true feature dim (handles the ragged tail without
            # any wrapper-side padding copy).  For interior blocks this is all-true.
            chunk = jnp.where(lane_g < (d_total - c * 128), chunk, 0.0)
        sq = chunk * chunk
        if c % 2 == 0:
            acc0 = acc0 + sq
        else:
            acc1 = acc1 + sq
    acc_ref[...] = acc_ref[...] + acc0 + acc1

    @pl.when(di == pl.num_programs(1) - 1)
    def _finalize():
        ssq = jnp.sum(acc_ref[...], axis=1, keepdims=True)    # (tn, 1) one XLU reduce
        norm = jnp.sqrt(ssq)
        pen = (norm - 1.0) ** 2
        out_ref[0, 0] = jnp.sum(pen)                           # per-batch-tile partial


def _select_tiles(n, d, itemsize, block_bytes):
    """Pick (tn, td): batch-tile rows and lane-tile width (multiple of 128)."""
    sub = 8 if itemsize >= 4 else (16 if itemsize == 2 else 32)
    lanes_cover = 128 * pl.cdiv(d, 128)
    max_lanes = _MAX_CHUNKS * 128

    # Batch tile: a multiple of `sub` that divides N (prefer >=2 tiles for megacore),
    # capped at 64 rows; otherwise fall back to the full batch (full-extent block).
    if n % sub == 0 and n > sub:
        tn = sub
        hi = (min(64, n // 2) // sub) * sub
        for cand in range(hi, sub - 1, -sub):
            if n % cand == 0:
                tn = cand
                break
    else:
        tn = n

    # Lane tile: multiple of 128 targeting ~block_bytes per input block.
    td = (block_bytes // max(tn * itemsize, 1)) // 128 * 128
    td = int(max(128, min(td, max_lanes, lanes_cover)))
    return tn, td


def gradient_penalty_from_grad(grad_interp, *, block_bytes=1 << 20):
    """Pallas part of GradientPenaltyLoss: mean((||grad_interp||_2 - 1)^2).

    grad_interp: (N, ...) array, flattened per-sample (same as .view(N, -1)).
    block_bytes: target bytes per input block (per grid step), ~1-8 MiB is ideal.
    """
    n = grad_interp.shape[0]
    g = grad_interp.reshape(n, -1)              # row-major reshape: no data movement
    d = g.shape[1]
    itemsize = g.dtype.itemsize

    tn, td = _select_tiles(n, d, itemsize, block_bytes)
    nb = n // tn
    nd = pl.cdiv(d, td)
    needs_mask = (d % td) != 0

    kernel = functools.partial(_gp_kernel, td=td, d_total=d, needs_mask=needs_mask)

    # Only raise the scoped-VMEM limit if the requested blocks actually need it
    # (keeps the call portable across v5e 16 MiB / v6e 32 MiB / v7x 32 MiB defaults).
    block_in_bytes = tn * td * itemsize
    vmem_needed = 2 * block_in_bytes + tn * 128 * 4 + (1 << 20)
    vmem_limit = None if vmem_needed <= (16 << 20) else int(
        min(vmem_needed + (4 << 20), 32 << 20))

    partials = pl.pallas_call(
        kernel,
        out_shape=jax.ShapeDtypeStruct((nb, 1), jnp.float32),
        grid_spec=pltpu.PrefetchScalarGridSpec(
            num_scalar_prefetch=0,
            grid=(nb, nd),
            in_specs=[pl.BlockSpec((tn, td), lambda bi, di: (bi, di))],
            out_specs=pl.BlockSpec((1, 1), lambda bi, di: (bi, 0),
                                   memory_space=pltpu.SMEM),
            scratch_shapes=[pltpu.VMEM((tn, 128), jnp.float32)],
        ),
        compiler_params=pltpu.CompilerParams(
            dimension_semantics=("parallel", "arbitrary"),   # batch ||, features reduce
            vmem_limit_bytes=vmem_limit),
        cost_estimate=pl.CostEstimate(
            flops=2 * n * d,
            transcendentals=n,
            bytes_accessed=n * d * itemsize + nb * 4),
    )(g)
    return jnp.sum(partials) / n                # finish the batch mean in the wrapper


def gradient_penalty_loss(critic_fn, interp):
    """JAX equivalent of GradientPenaltyLoss.forward(interp, interp_crit) where
    interp_crit = critic_fn(interp).

    torch.autograd.grad(interp_crit, interp, grad_outputs=ones) is exactly the
    gradient of sum(critic_fn(interp)) w.r.t. interp.
    """
    # TODO(synk): torch.autograd.grad itself has no Pallas equivalent; it is
    # realized with jax.grad here (outside the kernel).
    grad_interp = jax.grad(lambda x: jnp.sum(critic_fn(x)))(interp)
    return gradient_penalty_from_grad(grad_interp)


def _gradient_penalty_ref(grad_interp):
    """Pure-JAX reference mirroring the PyTorch forward (given grad_interp)."""
    n = grad_interp.shape[0]
    g = grad_interp.reshape(n, -1).astype(jnp.float32)
    norm = jnp.sqrt(jnp.sum(g * g, axis=1))
    return jnp.mean((norm - 1.0) ** 2)


if __name__ == "__main__":
    key = jax.random.PRNGKey(0)
    k1, k2, k3, k4, k5, k6, k7 = jax.random.split(key, 7)

    # --- Module-shaped test: critic over (N, C, H, W) interpolates -----------------
    N, C, H, W = 2, 4, 16, 16
    D = C * H * W
    HID = 32

    interp = jax.random.normal(k1, (N, C, H, W), dtype=jnp.float32)
    params = {
        "w1": 0.05 * jax.random.normal(k2, (D, HID), dtype=jnp.float32),
        "b1": 0.05 * jax.random.normal(k3, (HID,), dtype=jnp.float32),
        "w2": 0.05 * jax.random.normal(k4, (HID, 1), dtype=jnp.float32),
        "b2": 0.05 * jax.random.normal(k5, (1,), dtype=jnp.float32),
    }

    def critic(x):
        h = jnp.tanh(x.reshape(x.shape[0], -1) @ params["w1"] + params["b1"])
        return h @ params["w2"] + params["b2"]          # (N, 1) critic scores

    grad_interp = jax.grad(lambda xx: jnp.sum(critic(xx)))(interp)
    loss_full = jax.block_until_ready(gradient_penalty_loss(critic, interp))
    ref_full = jax.block_until_ready(_gradient_penalty_ref(grad_interp))
    assert jnp.isfinite(loss_full), "kernel produced non-finite loss"
    assert jnp.allclose(loss_full, ref_full, rtol=1e-5, atol=1e-6), (loss_full, ref_full)

    # --- Batch-tiled + multi-step reduction + ragged feature tail (no pad) ---------
    g2 = jax.random.normal(k6, (16, 5, 7, 9), dtype=jnp.float32)   # D = 315 (ragged)
    loss2 = jax.block_until_ready(
        gradient_penalty_from_grad(g2, block_bytes=8 * 128 * 4))   # td=128 -> 3 steps
    ref2 = jax.block_until_ready(_gradient_penalty_ref(g2))
    assert jnp.allclose(loss2, ref2, rtol=1e-5, atol=1e-5), (loss2, ref2)

    # --- bf16-on-the-wire path (cast after DMA, ragged tail masked in-kernel) ------
    g3 = jax.random.normal(k7, (16, 300), dtype=jnp.float32).astype(jnp.bfloat16)
    loss3 = jax.block_until_ready(gradient_penalty_from_grad(g3))
    ref3 = jax.block_until_ready(_gradient_penalty_ref(g3))
    assert jnp.allclose(loss3, ref3, rtol=1e-5, atol=1e-5), (loss3, ref3)

    print("KERNEL_OK")
</pallas_src>

<mosaic_0001>
module attributes {stable_mosaic.version = 11 : i64} {
  func.func @_gp_kernel(%arg0: i32, %arg1: i32, %arg2: memref<2x1024xf32, #tpu.memory_space<vmem>>, %arg3: memref<1x1xf32, #tpu.memory_space<smem>>, %arg4: memref<2x128xf32, #tpu.memory_space<vmem>>) attributes {dimension_semantics = [#tpu.dimension_semantics<parallel>, #tpu.dimension_semantics<arbitrary>], iteration_bounds = array<i64: 1, 1>, scalar_prefetch = 0 : i64, scratch_operands = 1 : i64, tpu.core_type = #tpu.core_type<tc>, window_params = [{transform_indices = @transform_0, window_bounds = array<i64: 2, 1024>}, {transform_indices = @transform_1, window_bounds = array<i64: 1, 1>}]} {
    %c0_i32 = arith.constant 0 : i32
    %0 = arith.cmpi eq, %arg1, %c0_i32 : i32
    %1 = arith.extui %0 : i1 to i32
    %c0_i32_0 = arith.constant 0 : i32
    %2 = arith.cmpi ne, %1, %c0_i32_0 : i32
    scf.if %2 {
      %cst_16 = arith.constant 0.000000e+00 : f32
      %36 = vector.broadcast %cst_16 : f32 to vector<2x128xf32>
      %c0_17 = arith.constant 0 : index
      %c0_18 = arith.constant 0 : index
      %37 = vector.load %arg4[%c0_17, %c0_18] : memref<2x128xf32, #tpu.memory_space<vmem>>, vector<2x128xf32>
      tpu.vector_store %arg4[%c0_17, %c0_18], %36 {strides = array<i32>} : memref<2x128xf32, #tpu.memory_space<vmem>>, vector<2x128xf32>,
    } else {
    }
    %cst = arith.constant 0.000000e+00 : f32
    %3 = vector.broadcast %cst : f32 to vector<2x128xf32>
    %cst_1 = arith.constant 0.000000e+00 : f32
    %4 = vector.broadcast %cst_1 : f32 to vector<2x128xf32>
    %c0 = arith.constant 0 : index
    %c0_2 = arith.constant 0 : index
    %5 = vector.load %arg2[%c0, %c0_2] : memref<2x1024xf32, #tpu.memory_space<vmem>>, vector<2x128xf32>
    %6 = arith.mulf %5, %5 : vector<2x128xf32>
    %7 = arith.addf %3, %6 : vector<2x128xf32>
    %c0_3 = arith.constant 0 : index
    %c128 = arith.constant 128 : index
    %8 = vector.load %arg2[%c0_3, %c128] : memref<2x1024xf32, #tpu.memory_space<vmem>>, vector<2x128xf32>
    %9 = arith.mulf %8, %8 : vector<2x128xf32>
    %10 = arith.addf %4, %9 : vector<2x128xf32>
    %c0_4 = arith.constant 0 : index
    %c256 = arith.constant 256 : index
    %11 = vector.load %arg2[%c0_4, %c256] : memref<2x1024xf32, #tpu.memory_space<vmem>>, vector<2x128xf32>
    %12 = arith.mulf %11, %11 : vector<2x128xf32>
    %13 = arith.addf %7, %12 : vector<2x128xf32>
    %c0_5 = arith.constant 0 : index
    %c384 = arith.constant 384 : index
    %14 = vector.load %arg2[%c0_5, %c384] : memref<2x1024xf32, #tpu.memory_space<vmem>>, vector<2x128xf32>
    %15 = arith.mulf %14, %14 : vector<2x128xf32>
    %16 = arith.addf %10, %15 : vector<2x128xf32>
    %c0_6 = arith.constant 0 : index
    %c512 = arith.constant 512 : index
    %17 = vector.load %arg2[%c0_6, %c512] : memref<2x1024xf32, #tpu.memory_space<vmem>>, vector<2x128xf32>
    %18 = arith.mulf %17, %17 : vector<2x128xf32>
    %19 = arith.addf %13, %18 : vector<2x128xf32>
    %c0_7 = arith.constant 0 : index
    %c640 = arith.constant 640 : index
    %20 = vector.load %arg2[%c0_7, %c640] : memref<2x1024xf32, #tpu.memory_space<vmem>>, vector<2x128xf32>
    %21 = arith.mulf %20, %20 : vector<2x128xf32>
    %22 = arith.addf %16, %21 : vector<2x128xf32>
    %c0_8 = arith.constant 0 : index
    %c768 = arith.constant 768 : index
    %23 = vector.load %arg2[%c0_8, %c768] : memref<2x1024xf32, #tpu.memory_space<vmem>>, vector<2x128xf32>
    %24 = arith.mulf %23, %23 : vector<2x128xf32>
    %25 = arith.addf %19, %24 : vector<2x128xf32>
    %c0_9 = arith.constant 0 : index
    %c896 = arith.constant 896 : index
    %26 = vector.load %arg2[%c0_9, %c896] : memref<2x1024xf32, #tpu.memory_space<vmem>>, vector<2x128xf32>
    %27 = arith.mulf %26, %26 : vector<2x128xf32>
    %28 = arith.addf %22, %27 : vector<2x128xf32>
    %c0_10 = arith.constant 0 : index
    %c0_11 = arith.constant 0 : index
    %29 = vector.load %arg4[%c0_10, %c0_11] : memref<2x128xf32, #tpu.memory_space<vmem>>, vector<2x128xf32>
    %30 = arith.addf %29, %25 : vector<2x128xf32>
    %31 = arith.addf %30, %28 : vector<2x128xf32>
    %c0_12 = arith.constant 0 : index
    %c0_13 = arith.constant 0 : index
    %32 = vector.load %arg4[%c0_12, %c0_13] : memref<2x128xf32, #tpu.memory_space<vmem>>, vector<2x128xf32>
    tpu.vector_store %arg4[%c0_12, %c0_13], %31 {strides = array<i32>} : memref<2x128xf32, #tpu.memory_space<vmem>>, vector<2x128xf32>,
    %c0_i32_14 = arith.constant 0 : i32
    %33 = arith.cmpi eq, %arg1, %c0_i32_14 : i32
    %34 = arith.extui %33 : i1 to i32
    %c0_i32_15 = arith.constant 0 : i32
    %35 = arith.cmpi ne, %34, %c0_i32_15 : i32
    scf.if %35 {
      %c0_16 = arith.constant 0 : index
      %c0_17 = arith.constant 0 : index
      %36 = vector.load %arg4[%c0_16, %c0_17] : memref<2x128xf32, #tpu.memory_space<vmem>>, vector<2x128xf32>
      %cst_18 = arith.constant dense<0.000000e+00> : vector<2xf32>
      %37 = vector.multi_reduction <add>, %36, %cst_18 [1] : vector<2x128xf32> to vector<2xf32>
      %38 = vector.shape_cast %37 : vector<2xf32> to vector<2x1xf32>
      %39 = math.sqrt %38 : vector<2x1xf32>
      %cst_19 = arith.constant 1.000000e+00 : f32
      %40 = vector.broadcast %cst_19 : f32 to vector<2x1xf32>
      %41 = arith.subf %39, %40 : vector<2x1xf32>
      %42 = arith.mulf %41, %41 : vector<2x1xf32>
      %43 = vector.shape_cast %42 : vector<2x1xf32> to vector<1x2x1xf32>
      %cst_20 = arith.constant dense<0.000000e+00> : vector<1xf32>
      %44 = vector.multi_reduction <add>, %43, %cst_20 [1, 2] : vector<1x2x1xf32> to vector<1xf32>
      %45 = vector.shape_cast %44 : vector<1xf32> to vector<1x1x1xf32>
      %46 = vector.extract %45[0, 0, 0] : f32 from vector<1x1x1xf32>
      %c0_21 = arith.constant 0 : index
      %c0_22 = arith.constant 0 : index
      %47 = memref.load %arg3[%c0_21, %c0_22] : memref<1x1xf32, #tpu.memory_space<smem>>
      memref.store %46, %arg3[%c0_21, %c0_22] : memref<1x1xf32, #tpu.memory_space<smem>>
    } else {
    }
    return
  }
  func.func @transform_0(%arg0: i32, %arg1: i32) -> (i32, i32) {
    %c0_i32 = arith.constant 0 : i32
    return %arg0, %arg1 : i32, i32
  }
  func.func @transform_1(%arg0: i32, %arg1: i32) -> (i32, i32) {
    %c0_i32 = arith.constant 0 : i32
    %c0_i32_0 = arith.constant 0 : i32
    return %arg0, %c0_i32 : i32, i32
  }
}

</mosaic_0001>

<llo_original>
// kernel: tpu_custom_call.1
$region0: #{tpu_custom_call.1}
  #allocation0 [shape = 'u32[]', space=smem, size = 0x4, offset = 0x4, fixed_abs, tag = 'smem constant byte address 0x4 - core index']
  #allocation1 [shape = 'u32[72,128]{1,0:T(1,128)}', space=vmem, size = 0x9000, scoped, tag = 'internal scratch']
  #allocation2 [shape = 'f32[2,128]{1,0:T(2,128)}', space=vmem, size = 0x400, scoped, tag = 'scratch operand']
  %s0 = inlined_call_operand.hbm [shape: f32[2,1024], index: 0, kind: input, shape index: {}]
  %s1 = inlined_call_operand.hbm [shape: f32[1,1], index: 1, kind: output, shape index: {}]
  %s2 = sld [smem:[#allocation0]]
  $region26: #{tpu_custom_call.1} parent=0
    _
  %s4 = ssub.s32 1, %s2
  %s5 = scalar_select 0, %s4, %s2
  $region1: #{tpu_custom_call.1} parent=0
    #allocation3 [shape = 'u8[8192]{0}', space=vmem, size = 0x2000, scoped, tag = 'input window, operand 0, single buffered']
    #allocation4 [shape = 's32[1]{0}', space=sflag, size = 0x4, scoped, tag = 'scoped memory for tpu_custom_call.1']
    #allocation5 [shape = 's32[1]{0}', space=sflag, size = 0x4, scoped, tag = 'scoped memory for tpu_custom_call.1']
    #allocation6 [shape = 'u8[512]{0}', space=smem, size = 0x200, scoped, tag = 'output window, operand 0, single buffered']
    %6 = vsyncpa [#allocation4], 0
    %7 = vsyncpa [#allocation5], 0
    // Predicated region
    $region2: #{tpu_custom_call.1} parent=1 // pred_check
      _
    $region3: #{tpu_custom_call.1} parent=1 // pred_check_branch
      %9 = sbr.rel (0) target = $region5
    $region4: #{tpu_custom_call.1} parent=1 // pred_region
      %11 = vsyncadd [#allocation4], 0
      %s13 = sshll.u32 %s0, 4
      %s14 = int_to_ptr.hbm [resolvable:$true] %s13
      %s15 = sshll.u32 [#allocation3], 4
      %s16 = int_to_ptr.vmem [resolvable:$true] %s15
      %18 = dma.hbm_to_vmem [thread:$0]  %s14, 256, %s16, [#allocation4]
    $region5: #{tpu_custom_call.1} parent=1 // pred_fallthru
      _
    // Predicated region
    $region6: #{tpu_custom_call.1} parent=1 // pred_check
      _
    $region7: #{tpu_custom_call.1} parent=1 // pred_check_branch
      %20 = sbr.rel (0) target = $region9
    $region8: #{tpu_custom_call.1} parent=1 // pred_region
      %22 = dma.done [#allocation4], 256
    $region9: #{tpu_custom_call.1} parent=1 // pred_fallthru
      _
    %p23 = scmp.eq.s32.totalorder 0, 0
    // Predicated region
    $region10: #{tpu_custom_call.1} parent=1 // pred_check
      %p24 = pneg %p23
    $region11: #{tpu_custom_call.1} parent=1 // pred_check_branch
      %26 = sbr.rel (%p24) target = $region13
    $region12: #{tpu_custom_call.1} parent=1 // pred_region
      %27 = vst [vmem:[#allocation2] sm:$0x3] 0.0
    $region13: #{tpu_custom_call.1} parent=1 // pred_fallthru
      _
    %v28 = vld [vmem:[#allocation3] sm:$0x3]
    %v29 = vmul.f32 %v28, %v28
    %v30 = vadd.f32 %v29, 0.0
    %v31 = vld [vmem:[#allocation3 + $0x2] sm:$0x3]
    %v32 = vmul.f32 %v31, %v31
    %v33 = vadd.f32 %v32, 0.0
    %v34 = vld [vmem:[#allocation3 + $0x4] sm:$0x3]
    %v35 = vmul.f32 %v34, %v34
    %v36 = vadd.f32 %v30, %v35
    %v37 = vld [vmem:[#allocation3 + $0x6] sm:$0x3]
    %v38 = vmul.f32 %v37, %v37
    %v39 = vadd.f32 %v33, %v38
    %v40 = vld [vmem:[#allocation3 + $0x8] sm:$0x3]
    %v41 = vmul.f32 %v40, %v40
    %v42 = vadd.f32 %v36, %v41
    %v43 = vld [vmem:[#allocation3 + $0xa] sm:$0x3]
    %v44 = vmul.f32 %v43, %v43
    %v45 = vadd.f32 %v39, %v44
    %v46 = vld [vmem:[#allocation3 + $0xc] sm:$0x3]
    %v47 = vmul.f32 %v46, %v46
    %v48 = vadd.f32 %v42, %v47
    %v49 = vld [vmem:[#allocation3 + $0xe] sm:$0x3]
    %v50 = vmul.f32 %v49, %v49
    %v51 = vadd.f32 %v45, %v50
    %v52 = vld [vmem:[#allocation2] sm:$0x3]
    %v53 = vadd.f32 %v52, %v48
    %v54 = vadd.f32 %v53, %v51
    %55 = vst [vmem:[#allocation2] sm:$0x3] %v54
    // Predicated region
    $region14: #{tpu_custom_call.1} parent=1 // pred_check
      %p56 = pneg %p23
    $region15: #{tpu_custom_call.1} parent=1 // pred_check_branch
      %58 = sbr.rel (%p56) target = $region17
    $region16: #{tpu_custom_call.1} parent=1 // pred_region
      %v59 = vld [vmem:[#allocation2] sm:$0x3]
      %vm60 = vcmask 1041408
      %v61 = vsel %vm60, %v59, 0.0
      %62 = vadd.xlane.f32.xlu0 %v61
      %v63 = vpop.xlane.xlu0 %62
      %v64 = vrsqrt.pop %v63
      %v65 = vmul.f32 %v64, %v63
      %v66 = vmul.f32 %v65, %v64
      %v67 = vmul.f32 0.5, %v66
      %v68 = vsub.f32 1.5, %v67
      %v69 = vmul.f32 %v64, %v68
      %v70 = vmul.f32 %v63, %v69
      %vm71 = vcmp.eq.f32.partialorder %v63, inf
      %v72 = vsel %vm71, %v63, %v70
      %vm73 = vcmp.eq.f32.partialorder %v63, 0.0
      %v74 = vand.u32 %v63, 2147483648
      %v75 = vsel %vm73, %v74, %v72
      %v76 = vsub.f32 %v75, 1.0
      %v77 = vmul.f32 %v76, %v76
      %vm78 = vcmask 1024
      %v79 = vsel %vm78, %v77, 0.0
      %80 = vadd.xlane.f32.xlu0 %v79
      %v81 = vpop.xlane.xlu0 %80
      %v82 = vrot.slane %v81, 4
      %v83 = vadd.f32 %v81, %v82
      %v84 = vrot.slane %v83, 2
      %v85 = vadd.f32 %v83, %v84
      %v86 = vrot.slane %v85, 1
      %v87 = vadd.f32 %v85, %v86
      %s88 = vtos %v87
      %s89 = scalar_lea.smem [#allocation6], 0
      %90 = sst [smem:[%s89]] %s88
    $region17: #{tpu_custom_call.1} parent=1 // pred_fallthru
      _
    // Predicated region
    $region18: #{tpu_custom_call.1} parent=1 // pred_check
      _
    $region19: #{tpu_custom_call.1} parent=1 // pred_check_branch
      %92 = sbr.rel (0) target = $region21
    $region20: #{tpu_custom_call.1} parent=1 // pred_region
      %94 = vsyncadd [#allocation5], 0
      %s96 = sshll.u32 %s1, 4
      %s97 = int_to_ptr.hbm [resolvable:$true] %s96
      %99 = dma.smem_to_hbm [#allocation6], 16, %s97, [#allocation5]
    $region21: #{tpu_custom_call.1} parent=1 // pred_fallthru
      _
    // Predicated region
    $region22: #{tpu_custom_call.1} parent=1 // pred_check
      _
    $region23: #{tpu_custom_call.1} parent=1 // pred_check_branch
      %101 = sbr.rel (0) target = $region25
    $region24: #{tpu_custom_call.1} parent=1 // pred_region
      %103 = dma.done [#allocation5], 16
    $region25: #{tpu_custom_call.1} parent=1 // pred_fallthru
      _
    %104 = sfence
    %105 = vsyncpa [#allocation4], 1
    %106 = vsyncpa [#allocation5], 1

</llo_original>
